<compile_context>
chip_gen: v5e
topology: v5e:2x2
jax: 0.10.0
libtpu: 0.0.40
codegen_flags: <defaults>
</compile_context>

<pallas_src>
import functools

import jax
import jax.numpy as jnp
from jax import lax
from jax.experimental import pallas as pl
from jax.experimental.pallas import tpu as pltpu


def _static_pow(x, p):
    """x**p for a static exponent; non-negative ints use exact repeated squaring."""
    if isinstance(p, int) and p >= 0:
        if p == 0:
            return jnp.ones_like(x)
        n, base, result = p, x, None
        while n:
            if n & 1:
                result = base if result is None else result * base
            n >>= 1
            if n:
                base = base * base
        return result
    return x ** p  # fallback (EUP exp/log path) for float powers


def _dense_reg_l1_kernel(pred_ref, target_ref, mask_ref, out_ref, *,
                         hw, tile, norm, smooth, mask_thresh, mask_power,
                         ragged):
    t = pl.program_id(0)

    pred = pred_ref[...].astype(jnp.float32)      # [B, C, tile]
    target = target_ref[...].astype(jnp.float32)  # [B, C, tile]
    m = mask_ref[...].astype(jnp.float32)         # [B, 1, tile]

    # ---- elementwise regression term -----------------------------------
    if norm:
        # pred/(target+1e-4) compared against ones  ->  fold the ones-fill.
        diff = pred / (target + 1e-4) - 1.0
    else:
        diff = pred - target

    if smooth:
        # SmoothL1Loss(reduction='none'), beta = 1.0 (PyTorch default)
        ad = jnp.abs(diff)
        elem = jnp.where(ad < 1.0, 0.5 * diff * diff, ad - 0.5)
    else:
        elem = jnp.abs(diff)

    # ---- channel-sum-first algebra (no [B, C, HW] mask broadcast) -------
    per_pix = jnp.sum(elem, axis=1, keepdims=True)            # [B, 1, tile]

    # ---- per-pixel mask weight: where(m >= thresh, m**p, 0) -------------
    m_w = jnp.where(m >= mask_thresh, _static_pow(m, mask_power), 0.0)

    if ragged:
        # Last tile may extend past HW; mask only the small [*,1,tile] tensors
        # (per_pix masking also kills any NaN/Inf from garbage padded lanes).
        lane = t * tile + lax.broadcasted_iota(jnp.int32, (1, 1, tile), 2)
        valid = lane < hw
        m_w = jnp.where(valid, m_w, 0.0)
        per_pix = jnp.where(valid, per_pix, 0.0)

    loss_partial = jnp.sum(per_pix * m_w)     # scalar, f32
    maskw_partial = jnp.sum(m_w)              # scalar, f32

    # Per-tile partial sums -> lane-dense (1, 8, 128) output block:
    # sublanes 0..3 carry loss_partial, sublanes 4..7 carry maskw_partial.
    row = lax.broadcasted_iota(jnp.int32, (1, 8, 128), 1)
    out_ref[...] = jnp.where(row < 4, loss_partial, maskw_partial)


def _sublane_tile(dtype):
    return max(8, 32 // max(1, jnp.dtype(dtype).itemsize))   # 8/16/32 for 4/2/1 B


def dense_reg_l1_loss(pred, target, mask, *, norm=False, smooth=False,
                      mask_thresh=0.9, mask_power=4,
                      max_block_bytes=2 * 1024 * 1024):
    """pred/target: [B, C, H, W] (f32 or bf16); mask: [B, 1, H, W]. Returns f32 scalar."""
    B, C, H, W = pred.shape
    assert target.shape == pred.shape
    assert target.dtype == pred.dtype
    assert mask.shape == (B, 1, H, W)
    HW = H * W

    # Lane-dense views: spatial dims collapse onto the lane axis (free reshape).
    pred2 = pred.reshape(B, C, HW)
    target2 = target.reshape(B, C, HW)
    mask2 = mask.reshape(B, 1, HW)

    # ---- dtype-correct VMEM budget -------------------------------------
    p_it = jnp.dtype(pred.dtype).itemsize
    m_it = jnp.dtype(mask.dtype).itemsize
    c_pad = -(-C // _sublane_tile(pred.dtype)) * _sublane_tile(pred.dtype)
    m_pad = _sublane_tile(mask.dtype)          # mask channel dim 1 pads to a full tile

    # Lanes per block so ONE pred/target block is ~max_block_bytes in VMEM.
    cap = max(128, (max_block_bytes // (B * c_pad * p_it)) // 128 * 128)
    # Extra guard: keep the total double-buffered footprint under ~40 MiB.
    per_lane_total = 2 * B * c_pad * p_it + B * m_pad * m_it
    cap_total = max(128, ((40 << 20) // (2 * per_lane_total)) // 128 * 128)
    cap = min(cap, cap_total)

    if HW <= cap:
        tile, n_t, ragged = HW, 1, False
    else:
        # Prefer a tile that divides HW (no ragged masking, no wasted DMA).
        tile = 0
        lo = max(128, cap // 2)
        for cand in range(cap, lo - 1, -128):
            if HW % cand == 0:
                tile = cand
                break
        if tile:
            n_t, ragged = HW // tile, False
        else:
            tile = cap
            n_t = pl.cdiv(HW, tile)
            ragged = True

    # Double-buffered input footprint (pred + target + mask blocks, padded).
    pred_block = B * c_pad * tile * p_it
    mask_block = B * m_pad * tile * m_it
    footprint = 2 * (2 * pred_block + mask_block)
    vmem_limit = int(min(48 << 20, max(16 << 20, 2 * footprint + (8 << 20))))

    kernel = functools.partial(
        _dense_reg_l1_kernel,
        hw=HW, tile=tile, norm=norm, smooth=smooth,
        mask_thresh=float(mask_thresh), mask_power=mask_power, ragged=ragged)

    cost = pl.CostEstimate(
        flops=8 * B * C * HW,
        transcendentals=0,
        bytes_accessed=int(2 * B * C * HW * p_it + B * HW * m_it
                           + n_t * 8 * 128 * 4))

    partials = pl.pallas_call(
        kernel,
        out_shape=jax.ShapeDtypeStruct((n_t, 8, 128), jnp.float32),
        grid=(n_t,),
        in_specs=[
            pl.BlockSpec((B, C, tile), lambda t: (0, 0, t)),
            pl.BlockSpec((B, C, tile), lambda t: (0, 0, t)),
            pl.BlockSpec((B, 1, tile), lambda t: (0, 0, t)),
        ],
        out_specs=pl.BlockSpec((1, 8, 128), lambda t: (t, 0, 0)),
        compiler_params=pltpu.CompilerParams(
            dimension_semantics=("parallel",),
            vmem_limit_bytes=vmem_limit),
        cost_estimate=cost,
    )(pred2, target2, mask2)

    # Finalize in the wrapper (keeps the grid carry-free / megacore friendly).
    loss_sum = jnp.sum(partials[:, 0, 0])
    maskw_sum = jnp.sum(partials[:, 4, 0])
    # Expanded-mask sum == C * sum(m_w); matches the PyTorch reduction.
    return loss_sum / (C * maskw_sum + 1e-4)


def _reference(pred, target, mask, *, norm=False, smooth=False,
               mask_thresh=0.9, mask_power=4):
    pred = pred.astype(jnp.float32)
    target = target.astype(jnp.float32)
    mask = mask.astype(jnp.float32)
    if norm:
        pred = pred / (target + 0.0001)
        target = target * 0.0 + 1.0
    m = (mask >= mask_thresh).astype(jnp.float32) * (mask ** mask_power)
    m = jnp.broadcast_to(m, pred.shape)
    d = pred - target
    if smooth:
        ad = jnp.abs(d)
        elem = jnp.where(ad < 1.0, 0.5 * d * d, ad - 0.5)
    else:
        elem = jnp.abs(d)
    return (elem * m).sum() / (m.sum() + 0.0001)


if __name__ == "__main__":
    key = jax.random.PRNGKey(0)
    k1, k2, k3 = jax.random.split(key, 3)

    B, C, H, W = 2, 4, 16, 16
    pred = jax.random.normal(k1, (B, C, H, W), dtype=jnp.float32)
    target = jax.random.normal(k2, (B, C, H, W), dtype=jnp.float32)
    mask = jax.random.uniform(k3, (B, 1, H, W), dtype=jnp.float32)

    # 1) default config (plain L1).
    out = jax.block_until_ready(dense_reg_l1_loss(pred, target, mask))
    ref = _reference(pred, target, mask)
    assert jnp.allclose(out, ref, rtol=1e-5, atol=1e-6), (out, ref)

    # 2) norm + smooth branches.
    out2 = jax.block_until_ready(
        dense_reg_l1_loss(pred, target, mask, norm=True, smooth=True))
    ref2 = _reference(pred, target, mask, norm=True, smooth=True)
    assert jnp.allclose(out2, ref2, rtol=1e-4, atol=1e-5), (out2, ref2)

    # 3) multi-tile "parallel" grid with a ragged last tile (HW=250, forced
    #    128-lane tiles via a tiny max_block_bytes).
    B3, C3, H3, W3 = 2, 3, 10, 25
    kk = jax.random.split(jax.random.PRNGKey(1), 3)
    p3 = jax.random.normal(kk[0], (B3, C3, H3, W3), dtype=jnp.float32)
    t3 = jax.random.normal(kk[1], (B3, C3, H3, W3), dtype=jnp.float32)
    m3 = jax.random.uniform(kk[2], (B3, 1, H3, W3), dtype=jnp.float32)
    out3 = jax.block_until_ready(
        dense_reg_l1_loss(p3, t3, m3, max_block_bytes=4096))
    ref3 = _reference(p3, t3, m3)
    assert jnp.allclose(out3, ref3, rtol=1e-5, atol=1e-6), (out3, ref3)

    # 4) bf16 inputs stream at half the HBM bytes; compute/accumulate in f32.
    pred_bf = pred.astype(jnp.bfloat16)
    targ_bf = target.astype(jnp.bfloat16)
    out4 = jax.block_until_ready(dense_reg_l1_loss(pred_bf, targ_bf, mask))
    ref4 = _reference(pred_bf.astype(jnp.float32),
                      targ_bf.astype(jnp.float32), mask)
    assert jnp.allclose(out4, ref4, rtol=1e-5, atol=1e-6), (out4, ref4)

    print("KERNEL_OK")
</pallas_src>

<mosaic_0001>
module attributes {stable_mosaic.version = 11 : i64} {
  func.func @_dense_reg_l1_kernel(%arg0: i32, %arg1: memref<2x4x256xf32, #tpu.memory_space<vmem>>, %arg2: memref<2x4x256xf32, #tpu.memory_space<vmem>>, %arg3: memref<2x1x256xf32, #tpu.memory_space<vmem>>, %arg4: memref<1x8x128xf32, #tpu.memory_space<vmem>>) attributes {dimension_semantics = [#tpu.dimension_semantics<parallel>], iteration_bounds = array<i64: 1>, scalar_prefetch = 0 : i64, scratch_operands = 0 : i64, tpu.core_type = #tpu.core_type<tc>, window_params = [{transform_indices = @transform_0, window_bounds = array<i64: 2, 4, 256>}, {transform_indices = @transform_1, window_bounds = array<i64: 2, 4, 256>}, {transform_indices = @transform_2, window_bounds = array<i64: 2, 1, 256>}, {transform_indices = @transform_3, window_bounds = array<i64: 1, 8, 128>}]} {
    %c0 = arith.constant 0 : index
    %c0_0 = arith.constant 0 : index
    %c0_1 = arith.constant 0 : index
    %0 = vector.load %arg1[%c0, %c0_0, %c0_1] : memref<2x4x256xf32, #tpu.memory_space<vmem>>, vector<2x4x256xf32>
    %c0_2 = arith.constant 0 : index
    %c0_3 = arith.constant 0 : index
    %c0_4 = arith.constant 0 : index
    %1 = vector.load %arg2[%c0_2, %c0_3, %c0_4] : memref<2x4x256xf32, #tpu.memory_space<vmem>>, vector<2x4x256xf32>
    %c0_5 = arith.constant 0 : index
    %c0_6 = arith.constant 0 : index
    %c0_7 = arith.constant 0 : index
    %2 = vector.load %arg3[%c0_5, %c0_6, %c0_7] : memref<2x1x256xf32, #tpu.memory_space<vmem>>, vector<2x1x256xf32>
    %3 = arith.subf %0, %1 : vector<2x4x256xf32>
    %4 = math.absf %3 : vector<2x4x256xf32>
    %cst = arith.constant dense<0.000000e+00> : vector<2x256xf32>
    %5 = vector.multi_reduction <add>, %4, %cst [1] : vector<2x4x256xf32> to vector<2x256xf32>
    %6 = vector.shape_cast %5 : vector<2x256xf32> to vector<2x1x256xf32>
    %cst_8 = arith.constant 0.899999976 : f32
    %7 = vector.broadcast %cst_8 : f32 to vector<2x1x256xf32>
    %8 = arith.cmpf oge, %2, %7 : vector<2x1x256xf32>
    %9 = arith.mulf %2, %2 : vector<2x1x256xf32>
    %10 = arith.mulf %9, %9 : vector<2x1x256xf32>
    %cst_9 = arith.constant 0.000000e+00 : f32
    %11 = vector.broadcast %cst_9 : f32 to vector<2x1x256xf32>
    %12 = arith.select %8, %10, %11 : vector<2x1x256xi1>, vector<2x1x256xf32>
    %13 = arith.mulf %6, %12 : vector<2x1x256xf32>
    %14 = vector.shape_cast %13 : vector<2x1x256xf32> to vector<1x2x1x256xf32>
    %cst_10 = arith.constant dense<0.000000e+00> : vector<1xf32>
    %15 = vector.multi_reduction <add>, %14, %cst_10 [1, 2, 3] : vector<1x2x1x256xf32> to vector<1xf32>
    %16 = vector.shape_cast %15 : vector<1xf32> to vector<1x1x1x1xf32>
    %17 = vector.extract %16[0, 0, 0, 0] : f32 from vector<1x1x1x1xf32>
    %18 = vector.shape_cast %12 : vector<2x1x256xf32> to vector<1x2x1x256xf32>
    %cst_11 = arith.constant dense<0.000000e+00> : vector<1xf32>
    %19 = vector.multi_reduction <add>, %18, %cst_11 [1, 2, 3] : vector<1x2x1x256xf32> to vector<1xf32>
    %20 = vector.shape_cast %19 : vector<1xf32> to vector<1x1x1x1xf32>
    %21 = vector.extract %20[0, 0, 0, 0] : f32 from vector<1x1x1x1xf32>
    %22 = tpu.iota {dimensions = array<i32: 1>} : vector<1x8x128xi32>
    %c4_i32 = arith.constant 4 : i32
    %23 = vector.broadcast %c4_i32 : i32 to vector<1x8x128xi32>
    %24 = arith.cmpi slt, %22, %23 : vector<1x8x128xi32>
    %25 = vector.broadcast %17 : f32 to vector<1x8x128xf32>
    %26 = vector.broadcast %21 : f32 to vector<1x8x128xf32>
    %27 = arith.select %24, %25, %26 : vector<1x8x128xi1>, vector<1x8x128xf32>
    %c0_12 = arith.constant 0 : index
    %c0_13 = arith.constant 0 : index
    %c0_14 = arith.constant 0 : index
    %28 = vector.load %arg4[%c0_12, %c0_13, %c0_14] : memref<1x8x128xf32, #tpu.memory_space<vmem>>, vector<1x8x128xf32>
    tpu.vector_store %arg4[%c0_12, %c0_13, %c0_14], %27 {strides = array<i32>} : memref<1x8x128xf32, #tpu.memory_space<vmem>>, vector<1x8x128xf32>,
    return
  }
  func.func @transform_0(%arg0: i32) -> (i32, i32, i32) {
    %c0_i32 = arith.constant 0 : i32
    %c0_i32_0 = arith.constant 0 : i32
    %c0_i32_1 = arith.constant 0 : i32
    return %c0_i32, %c0_i32_0, %arg0 : i32, i32, i32
  }
  func.func @transform_1(%arg0: i32) -> (i32, i32, i32) {
    %c0_i32 = arith.constant 0 : i32
    %c0_i32_0 = arith.constant 0 : i32
    %c0_i32_1 = arith.constant 0 : i32
    return %c0_i32, %c0_i32_0, %arg0 : i32, i32, i32
  }
  func.func @transform_2(%arg0: i32) -> (i32, i32, i32) {
    %c0_i32 = arith.constant 0 : i32
    %c0_i32_0 = arith.constant 0 : i32
    %c0_i32_1 = arith.constant 0 : i32
    return %c0_i32, %c0_i32_0, %arg0 : i32, i32, i32
  }
  func.func @transform_3(%arg0: i32) -> (i32, i32, i32) {
    %c0_i32 = arith.constant 0 : i32
    %c0_i32_0 = arith.constant 0 : i32
    %c0_i32_1 = arith.constant 0 : i32
    return %arg0, %c0_i32, %c0_i32_0 : i32, i32, i32
  }
}

</mosaic_0001>

<llo_original>
// kernel: tpu_custom_call.1
$region0: #{tpu_custom_call.1}
  #allocation0 [shape = 'u32[]', space=smem, size = 0x4, offset = 0x4, fixed_abs, tag = 'smem constant byte address 0x4 - core index']
  #allocation1 [shape = 'u32[72,128]{1,0:T(1,128)}', space=vmem, size = 0x9000, scoped, tag = 'internal scratch']
  %s0 = inlined_call_operand.hbm [shape: f32[2,4,256], index: 0, kind: input, shape index: {}]
  %s1 = inlined_call_operand.hbm [shape: f32[2,4,256], index: 1, kind: input, shape index: {}]
  %s2 = inlined_call_operand.hbm [shape: f32[2,1,256], index: 2, kind: input, shape index: {}]
  %s3 = inlined_call_operand.hbm [shape: f32[1,8,128], index: 3, kind: output, shape index: {}]
  %s4 = sld [smem:[#allocation0]]
  $region34: #{tpu_custom_call.1} parent=0
    _
  %s6 = ssub.s32 1, %s4
  %s7 = scalar_select 0, %s6, %s4
  $region1: #{tpu_custom_call.1} parent=0
    #allocation2 [shape = 'u8[8192]{0}', space=vmem, size = 0x2000, scoped, tag = 'input window, operand 0, single buffered']
    #allocation3 [shape = 's32[1]{0}', space=sflag, size = 0x4, scoped, tag = 'scoped memory for tpu_custom_call.1']
    #allocation4 [shape = 's32[1]{0}', space=sflag, size = 0x4, scoped, tag = 'scoped memory for tpu_custom_call.1']
    #allocation5 [shape = 'u8[8192]{0}', space=vmem, size = 0x2000, scoped, tag = 'input window, operand 1, single buffered']
    #allocation6 [shape = 's32[1]{0}', space=sflag, size = 0x4, scoped, tag = 'scoped memory for tpu_custom_call.1']
    #allocation7 [shape = 'u8[2048]{0}', space=vmem, size = 0x800, scoped, tag = 'input window, operand 2, single buffered']
    #allocation8 [shape = 'u8[4096]{0}', space=vmem, size = 0x1000, scoped, tag = 'output window, operand 0, single buffered']
    %8 = vsyncpa [#allocation3], 0
    %9 = vsyncpa [#allocation6], 0
    %10 = vsyncpa [#allocation4], 0
    // Predicated region
    $region2: #{tpu_custom_call.1} parent=1 // pred_check
      _
    $region3: #{tpu_custom_call.1} parent=1 // pred_check_branch
      %12 = sbr.rel (0) target = $region5
    $region4: #{tpu_custom_call.1} parent=1 // pred_region
      %14 = vsyncadd [#allocation3], 0
      %s15 = sshll.u32 %s0, 4
      %s16 = int_to_ptr.hbm [resolvable:$true] %s15
      %s17 = sshll.u32 [#allocation2], 4
      %s18 = int_to_ptr.vmem [resolvable:$true] %s17
      %23 = dma.hbm_to_vmem [thread:$0]  %s16, 256, %s18, [#allocation3], 128, 128, 8
    $region5: #{tpu_custom_call.1} parent=1 // pred_fallthru
      _
    // Predicated region
    $region6: #{tpu_custom_call.1} parent=1 // pred_check
      _
    $region7: #{tpu_custom_call.1} parent=1 // pred_check_branch
      %25 = sbr.rel (0) target = $region9
    $region8: #{tpu_custom_call.1} parent=1 // pred_region
      %27 = vsyncadd [#allocation6], 0
      %s28 = sshll.u32 %s1, 4
      %s29 = int_to_ptr.hbm [resolvable:$true] %s28
      %s30 = sshll.u32 [#allocation5], 4
      %s31 = int_to_ptr.vmem [resolvable:$true] %s30
      %36 = dma.hbm_to_vmem [thread:$0]  %s29, 256, %s31, [#allocation6], 128, 128, 8
    $region9: #{tpu_custom_call.1} parent=1 // pred_fallthru
      _
    // Predicated region
    $region10: #{tpu_custom_call.1} parent=1 // pred_check
      _
    $region11: #{tpu_custom_call.1} parent=1 // pred_check_branch
      %38 = sbr.rel (0) target = $region13
    $region12: #{tpu_custom_call.1} parent=1 // pred_region
      %40 = vsyncadd [#allocation6], 0
      %s41 = sshll.u32 %s2, 4
      %s42 = int_to_ptr.hbm [resolvable:$true] %s41
      %s43 = sshll.u32 [#allocation7], 4
      %s44 = int_to_ptr.vmem [resolvable:$true] %s43
      %49 = dma.hbm_to_vmem [thread:$0]  %s42, 64, %s44, [#allocation6], 32, 32, 2
    $region13: #{tpu_custom_call.1} parent=1 // pred_fallthru
      _
    // Predicated region
    $region14: #{tpu_custom_call.1} parent=1 // pred_check
      _
    $region15: #{tpu_custom_call.1} parent=1 // pred_check_branch
      %51 = sbr.rel (0) target = $region17
    $region16: #{tpu_custom_call.1} parent=1 // pred_region
      %53 = dma.done [#allocation3], 256
    $region17: #{tpu_custom_call.1} parent=1 // pred_fallthru
      _
    // Predicated region
    $region18: #{tpu_custom_call.1} parent=1 // pred_check
      _
    $region19: #{tpu_custom_call.1} parent=1 // pred_check_branch
      %55 = sbr.rel (0) target = $region21
    $region20: #{tpu_custom_call.1} parent=1 // pred_region
      %57 = dma.done [#allocation6], 256
    $region21: #{tpu_custom_call.1} parent=1 // pred_fallthru
      _
    // Predicated region
    $region22: #{tpu_custom_call.1} parent=1 // pred_check
      _
    $region23: #{tpu_custom_call.1} parent=1 // pred_check_branch
      %59 = sbr.rel (0) target = $region25
    $region24: #{tpu_custom_call.1} parent=1 // pred_region
      %61 = dma.done [#allocation6], 64
    $region25: #{tpu_custom_call.1} parent=1 // pred_fallthru
      _
    %v62 = vld [vmem:[#allocation2] sm:$0xff]
    %v63 = vld [vmem:[#allocation2 + $0x8] sm:$0xff]
    %v64 = vld [vmem:[#allocation5] sm:$0xff]
    %v65 = vld [vmem:[#allocation5 + $0x8] sm:$0xff]
    %v66 = vld [vmem:[#allocation7] sm:$0x3]
    %v67 = vld [vmem:[#allocation7 + $0x2] sm:$0x3]
    %v68 = vsub.f32 %v62, %v64
    %v69 = vsub.f32 %v63, %v65
    %v70 = vand.u32 2147483647, %v68
    %v71 = vand.u32 2147483647, %v69
    %74 = vst [vmem:[#allocation1] ss:$2 sm:$0xff] %v70
    %v75 = vld.sshfl [vmem:[#allocation1] sm:$0xff pattern:$0x75316420]
    %v76 = vld.sshfl [vmem:[#allocation1 + $0x8] sm:$0xff pattern:$0x75316420]
    %s77 = scalar_lea.vmem [#allocation1], 16
    %78 = vst [vmem:[%s77] ss:$2 sm:$0xff] %v71
    %v79 = vld.sshfl [vmem:[#allocation1 + $0x10] sm:$0xff pattern:$0x75316420]
    %v80 = vld.sshfl [vmem:[#allocation1 + $0x18] sm:$0xff pattern:$0x75316420]
    %vm85 = vcmask 1043456
    %v86 = vsel %vm85, %v75, 0.0
    %v87 = vrot.slane %v86, 4
    %v88 = vadd.f32 %v86, %v87
    %v89 = vrot.slane %v88, 2
    %v90 = vadd.f32 %v88, %v89
    %v91 = vrot.slane %v90, 1
    %v92 = vadd.f32 %v90, %v91
    %v93 = vsel %vm85, %v76, 0.0
    %v94 = vrot.slane %v93, 4
    %v95 = vadd.f32 %v93, %v94
    %v96 = vrot.slane %v95, 2
    %v97 = vadd.f32 %v95, %v96
    %v98 = vrot.slane %v97, 1
    %v99 = vadd.f32 %v97, %v98
    %v100 = vsel %vm85, %v79, 0.0
    %v101 = vrot.slane %v100, 4
    %v102 = vadd.f32 %v100, %v101
    %v103 = vrot.slane %v102, 2
    %v104 = vadd.f32 %v102, %v103
    %v105 = vrot.slane %v104, 1
    %v106 = vadd.f32 %v104, %v105
    %v107 = vsel %vm85, %v80, 0.0
    %v108 = vrot.slane %v107, 4
    %v109 = vadd.f32 %v107, %v108
    %v110 = vrot.slane %v109, 2
    %v111 = vadd.f32 %v109, %v110
    %v112 = vrot.slane %v111, 1
    %v113 = vadd.f32 %v111, %v112
    %vm114 = vcmp.ge.f32.partialorder %v66, 0.9
    %vm115 = vcmp.ge.f32.partialorder %v67, 0.9
    %v116 = vmul.f32 %v66, %v66
    %v117 = vmul.f32 %v67, %v67
    %v118 = vmul.f32 %v116, %v116
    %v119 = vmul.f32 %v117, %v117
    %v120 = vsel %vm114, %v118, 0.0
    %v121 = vsel %vm115, %v119, 0.0
    %v124 = vperm.slane %v120, 0
    %v125 = vperm.slane %v120, 1
    %v126 = vperm.slane %v121, 0
    %v127 = vperm.slane %v121, 1
    %v132 = vmul.f32 %v92, %v124
    %v133 = vmul.f32 %v99, %v125
    %v134 = vmul.f32 %v106, %v126
    %v135 = vmul.f32 %v113, %v127
    %vm136 = vcmask 1040384
    %v137 = vsel %vm136, %v132, 0.0
    %v138 = vsel %vm136, %v133, 0.0
    %v139 = vadd.f32 %v137, %v138
    %v140 = vsel %vm136, %v134, 0.0
    %v141 = vadd.f32 %v139, %v140
    %v142 = vsel %vm136, %v135, 0.0
    %v143 = vadd.f32 %v141, %v142
    %144 = vadd.xlane.f32.xlu0 %v143
    %v145 = vpop.xlane.xlu0 %144
    %v146 = vrot.slane %v145, 4
    %v147 = vadd.f32 %v145, %v146
    %v148 = vrot.slane %v147, 2
    %v149 = vadd.f32 %v147, %v148
    %v150 = vrot.slane %v149, 1
    %v151 = vadd.f32 %v149, %v150
    %s152 = vtos %v151
    %v153 = vsel %vm136, %v124, 0.0
    %v154 = vsel %vm136, %v125, 0.0
    %v155 = vadd.f32 %v153, %v154
    %v156 = vsel %vm136, %v126, 0.0
    %v157 = vadd.f32 %v155, %v156
    %v158 = vsel %vm136, %v127, 0.0
    %v159 = vadd.f32 %v157, %v158
    %160 = vadd.xlane.f32.xlu0 %v159
    %v161 = vpop.xlane.xlu0 %160
    %v162 = vrot.slane %v161, 4
    %v163 = vadd.f32 %v161, %v162
    %v164 = vrot.slane %v163, 2
    %v165 = vadd.f32 %v163, %v164
    %v166 = vrot.slane %v165, 1
    %v167 = vadd.f32 %v165, %v166
    %s168 = vtos %v167
    %v169 = vlaneseq
    %v170 = vshrl.u32 %v169, 7
    %vm171 = vcmp.lt.s32.totalorder %v170, 4
    %v172 = vstv %s152
    %v173 = vstv %s168
    %v174 = vsel %vm171, %v172, %v173
    %175 = vst [vmem:[#allocation8] sm:$0xff] %v174
    // Predicated region
    $region26: #{tpu_custom_call.1} parent=1 // pred_check
      _
    $region27: #{tpu_custom_call.1} parent=1 // pred_check_branch
      %177 = sbr.rel (0) target = $region29
    $region28: #{tpu_custom_call.1} parent=1 // pred_region
      %179 = vsyncadd [#allocation4], 0
      %s181 = sshll.u32 [#allocation8], 4
      %s182 = int_to_ptr.vmem [resolvable:$true] %s181
      %s183 = sshll.u32 %s3, 4
      %s184 = int_to_ptr.hbm [resolvable:$true] %s183
      %186 = dma.vmem_to_hbm [thread:$0]  %s182, 128, %s184, [#allocation4]
    $region29: #{tpu_custom_call.1} parent=1 // pred_fallthru
      _
    // Predicated region
    $region30: #{tpu_custom_call.1} parent=1 // pred_check
      _
    $region31: #{tpu_custom_call.1} parent=1 // pred_check_branch
      %188 = sbr.rel (0) target = $region33
    $region32: #{tpu_custom_call.1} parent=1 // pred_region
      %190 = dma.done [#allocation4], 128
    $region33: #{tpu_custom_call.1} parent=1 // pred_fallthru
      _
    %191 = vsyncpa [#allocation3], 1
    %192 = vsyncpa [#allocation6], 1
    %193 = vsyncpa [#allocation4], 1

</llo_original>
